<compile_context>
chip_gen: v5e
topology: v5e:2x2
jax: 0.10.0
libtpu: 0.0.40
codegen_flags: <defaults>
</compile_context>

<pallas_src>
import jax
import jax.numpy as jnp
from jax.experimental import pallas as pl
from jax.experimental.pallas import tpu as pltpu


def _round_up(x, m):
    return ((x + m - 1) // m) * m


def _make_kernel(hp):
    def kernel(x_ref, w1_ref, b1_ref, w2c_ref, b2c_ref, w2m_ref, b2m_ref,
               logit_ref, mapped_ref):
        # x:   [TB, S]     compute dtype (bf16)
        # w1:  [S, 2*HP]   fused [checker | mapper] first layer (per-branch zero-padded)
        # b1:  [1, 2*HP]   f32
        # w2c: [1, HP]     f32 row vector (checker second layer)
        # b2c: [1, 1]      f32
        # w2m: [HP, T]     compute dtype (mapper second layer)
        # b2m: [1, T]      f32
        x = x_ref[...]

        # Fused first layer for both branches (shared LHS -> one wide MXU pass),
        # f32 accumulation + bias + ReLU.
        h = jnp.dot(x, w1_ref[...], preferred_element_type=jnp.float32) + b1_ref[...]
        h = jnp.maximum(h, 0.0)                       # [TB, 2*HP] f32

        h_c = h[:, :hp]                               # checker hidden (lane offset 0)
        h_m = h[:, hp:]                               # mapper hidden  (lane offset HP, 128-aligned)

        # Checker head: 1-wide output -> VPU multiply + XLU row-reduce (keeps the MXU free,
        # no skinny N=1 matmul, no padded output slab).
        logit = jnp.sum(h_c * w2c_ref[...], axis=-1, keepdims=True) + b2c_ref[...]
        logit_ref[...] = logit.astype(logit_ref.dtype)

        # Mapper head: lane-dense matmul straight to the true target width.
        mapped = jnp.dot(h_m.astype(w2m_ref.dtype), w2m_ref[...],
                         preferred_element_type=jnp.float32) + b2m_ref[...]
        mapped_ref[...] = mapped.astype(mapped_ref.dtype)

    return kernel


def metaphor_morphism_forward(state, params, *, block_b=1024,
                              compute_dtype=jnp.bfloat16,
                              out_dtype=jnp.float32):
    """state: [B, S].  Returns (logit [B, 1], mapped_state [B, T]) in out_dtype."""
    B, S = state.shape
    H = params["w1c"].shape[1]
    T = params["w2m"].shape[1]

    f32 = jnp.float32
    HP = _round_up(H, 128)          # per-branch padded hidden width (lane-dense)
    H2P = 2 * HP
    cb = jnp.dtype(compute_dtype).itemsize
    ob = jnp.dtype(out_dtype).itemsize

    # ---- batch tile selection --------------------------------------------------------------
    TB = min(block_b, _round_up(B, 8))
    Bp8 = _round_up(B, 8)
    # v7x megacore: if the whole batch fits in one tile but spans >8 rows, split into >=2
    # grid steps so the "parallel" batch axis can be sharded across both TensorCores.
    if Bp8 > 8 and Bp8 <= TB:
        TB = max(8, _round_up((Bp8 + 1) // 2, 8))

    def vmem_need(tb):
        tiles = 2 * tb * S * cb + 2 * tb * (1 + T) * ob                    # dbl-buffered in/out tiles
        weights = 2 * ((S * H2P + HP * T) * cb + (H2P + HP + 1 + T) * 4)   # residents (dbl-buffered)
        temps = tb * H2P * 4 + tb * HP * cb + tb * (1 + T) * 4             # h f32, bf16 h_m copy, heads
        return tiles + weights + temps

    VMEM_CEILING = 48 << 20          # stay well inside v7x's 64 MiB/TC (v5e/v6e have 128 MiB)
    while TB > 8 and vmem_need(TB) > VMEM_CEILING:
        TB = max(8, _round_up(TB // 2, 8))

    B_pad = _round_up(B, TB)
    vmem_limit = min(VMEM_CEILING, max(32 << 20, int(vmem_need(TB) * 1.5)))

    # ---- host-side weight packing (layout prep only; all padding is exact zeros) ------------
    w1 = jnp.zeros((S, H2P), f32)
    w1 = w1.at[:, :H].set(params["w1c"])
    w1 = w1.at[:, HP:HP + H].set(params["w1m"])
    w1 = w1.astype(compute_dtype)

    b1 = jnp.zeros((1, H2P), f32)
    b1 = b1.at[:, :H].set(params["b1c"])
    b1 = b1.at[:, HP:HP + H].set(params["b1m"])

    w2c = jnp.zeros((1, HP), f32).at[:, :H].set(params["w2c"].T)     # row vector, f32 (VPU head)
    b2c = params["b2c"].astype(f32)                                   # (1, 1)

    w2m = jnp.zeros((HP, T), f32).at[:H, :].set(params["w2m"]).astype(compute_dtype)
    b2m = params["b2m"].astype(f32)                                   # (1, T)

    x = state.astype(compute_dtype)
    if B_pad != B:
        x = jnp.pad(x, ((0, B_pad - B), (0, 0)))

    grid = (B_pad // TB,)
    const = lambda shape: pl.BlockSpec(shape, lambda i: (0, 0))       # resident weights/biases
    # (pipeline_mode=pl.Buffered(1) on the resident specs would halve their VMEM copies;
    #  negligible at these sizes, so left at the default double-buffering.)

    logit, mapped = pl.pallas_call(
        _make_kernel(HP),
        out_shape=(jax.ShapeDtypeStruct((B_pad, 1), out_dtype),
                   jax.ShapeDtypeStruct((B_pad, T), out_dtype)),
        grid=grid,
        in_specs=[
            pl.BlockSpec((TB, S), lambda i: (i, 0)),    # activations: tiled over batch
            const((S, H2P)),
            const((1, H2P)),
            const((1, HP)),
            const((1, 1)),
            const((HP, T)),
            const((1, T)),
        ],
        out_specs=(
            pl.BlockSpec((TB, 1), lambda i: (i, 0)),    # narrow outputs: no 128-lane padded slab
            pl.BlockSpec((TB, T), lambda i: (i, 0)),
        ),
        compiler_params=pltpu.CompilerParams(
            dimension_semantics=("parallel",),          # megacore sharding on v7x
            vmem_limit_bytes=vmem_limit,
        ),
    )(x, w1, b1, w2c, b2c, w2m, b2m)

    return logit[:B], mapped[:B]


def init_params(key, source_dim, target_dim, hidden_dim):
    """Deterministic PyTorch-Linear-style init: U(-1/sqrt(fan_in), 1/sqrt(fan_in))."""
    ks = jax.random.split(key, 8)

    def lin(kw, kb, fan_in, fan_out):
        bound = 1.0 / jnp.sqrt(jnp.float32(fan_in))
        w = jax.random.uniform(kw, (fan_in, fan_out), jnp.float32, -bound, bound)
        b = jax.random.uniform(kb, (1, fan_out), jnp.float32, -bound, bound)
        return w, b

    w1c, b1c = lin(ks[0], ks[1], source_dim, hidden_dim)
    w2c, b2c = lin(ks[2], ks[3], hidden_dim, 1)
    w1m, b1m = lin(ks[4], ks[5], source_dim, hidden_dim)
    w2m, b2m = lin(ks[6], ks[7], hidden_dim, target_dim)
    return dict(w1c=w1c, b1c=b1c, w2c=w2c, b2c=b2c,
                w1m=w1m, b1m=b1m, w2m=w2m, b2m=b2m)


def _reference(state, p, compute_dtype=jnp.bfloat16):
    """Pure-JAX reference with the same precision policy as the kernel
    (bf16 first-layer / mapper matmuls with f32 accumulation; f32 checker head)."""
    f32 = jnp.float32
    x = state.astype(compute_dtype)

    h_c = jnp.dot(x, p["w1c"].astype(compute_dtype), preferred_element_type=f32) + p["b1c"]
    h_c = jnp.maximum(h_c, 0.0)
    logit = jnp.dot(h_c, p["w2c"], preferred_element_type=f32) + p["b2c"]

    h_m = jnp.dot(x, p["w1m"].astype(compute_dtype), preferred_element_type=f32) + p["b1m"]
    h_m = jnp.maximum(h_m, 0.0)
    mapped = jnp.dot(h_m.astype(compute_dtype), p["w2m"].astype(compute_dtype),
                     preferred_element_type=f32) + p["b2m"]
    return logit, mapped


if __name__ == "__main__":
    B, SOURCE_DIM, TARGET_DIM, HIDDEN_DIM = 2, 16, 8, 32

    key = jax.random.PRNGKey(0)
    k_state, k_params = jax.random.split(key)

    state = jax.random.normal(k_state, (B, SOURCE_DIM), jnp.float32)
    params = init_params(k_params, SOURCE_DIM, TARGET_DIM, HIDDEN_DIM)

    logit, mapped = metaphor_morphism_forward(state, params)
    jax.block_until_ready((logit, mapped))

    ref_logit, ref_mapped = _reference(state, params)
    assert logit.shape == (B, 1) and mapped.shape == (B, TARGET_DIM)
    assert jnp.allclose(logit, ref_logit, atol=2e-3, rtol=2e-3)
    assert jnp.allclose(mapped, ref_mapped, atol=2e-3, rtol=2e-3)

    print("KERNEL_OK")
</pallas_src>

<mosaic_0001>
module attributes {stable_mosaic.version = 11 : i64} {
  func.func @kernel(%arg0: i32, %arg1: memref<8x16xbf16, #tpu.memory_space<vmem>>, %arg2: memref<16x256xbf16, #tpu.memory_space<vmem>>, %arg3: memref<1x256xf32, #tpu.memory_space<vmem>>, %arg4: memref<1x128xf32, #tpu.memory_space<vmem>>, %arg5: memref<1x1xf32, #tpu.memory_space<vmem>>, %arg6: memref<128x8xbf16, #tpu.memory_space<vmem>>, %arg7: memref<1x8xf32, #tpu.memory_space<vmem>>, %arg8: memref<8x1xf32, #tpu.memory_space<vmem>>, %arg9: memref<8x8xf32, #tpu.memory_space<vmem>>) attributes {dimension_semantics = [#tpu.dimension_semantics<parallel>], iteration_bounds = array<i64: 1>, scalar_prefetch = 0 : i64, scratch_operands = 0 : i64, tpu.core_type = #tpu.core_type<tc>, window_params = [{transform_indices = @transform_0, window_bounds = array<i64: 8, 16>}, {pipeline_mode = #tpu.pipeline_mode<synchronous>, transform_indices = @transform_1, window_bounds = array<i64: 16, 256>}, {pipeline_mode = #tpu.pipeline_mode<synchronous>, transform_indices = @transform_2, window_bounds = array<i64: 1, 256>}, {pipeline_mode = #tpu.pipeline_mode<synchronous>, transform_indices = @transform_3, window_bounds = array<i64: 1, 128>}, {pipeline_mode = #tpu.pipeline_mode<synchronous>, transform_indices = @transform_4, window_bounds = array<i64: 1, 1>}, {pipeline_mode = #tpu.pipeline_mode<synchronous>, transform_indices = @transform_5, window_bounds = array<i64: 128, 8>}, {pipeline_mode = #tpu.pipeline_mode<synchronous>, transform_indices = @transform_6, window_bounds = array<i64: 1, 8>}, {transform_indices = @transform_7, window_bounds = array<i64: 8, 1>}, {transform_indices = @transform_8, window_bounds = array<i64: 8, 8>}]} {
    %c0 = arith.constant 0 : index
    %c0_0 = arith.constant 0 : index
    %0 = vector.load %arg1[%c0, %c0_0] : memref<8x16xbf16, #tpu.memory_space<vmem>>, vector<8x16xbf16>
    %c0_1 = arith.constant 0 : index
    %c0_2 = arith.constant 0 : index
    %1 = vector.load %arg2[%c0_1, %c0_2] : memref<16x256xbf16, #tpu.memory_space<vmem>>, vector<16x256xbf16>
    %cst = arith.constant dense<0.000000e+00> : vector<8x256xf32>
    %2 = tpu.matmul %0, %1, %cst {dimension_numbers = #tpu.dot_dimension_numbers<[1], [0], [0], [1], [0, 0, 1, 1], [], []>} : vector<8x16xbf16>, vector<16x256xbf16>, vector<8x256xf32> -> vector<8x256xf32>
    %c0_3 = arith.constant 0 : index
    %c0_4 = arith.constant 0 : index
    %3 = vector.load %arg3[%c0_3, %c0_4] : memref<1x256xf32, #tpu.memory_space<vmem>>, vector<1x256xf32>
    %4 = vector.broadcast %3 : vector<1x256xf32> to vector<8x256xf32>
    %5 = arith.addf %2, %4 : vector<8x256xf32>
    %cst_5 = arith.constant 0.000000e+00 : f32
    %6 = vector.broadcast %cst_5 : f32 to vector<8x256xf32>
    %7 = arith.maximumf %5, %6 : vector<8x256xf32>
    %8 = vector.extract_strided_slice %7 {offsets = [0, 0], sizes = [8, 128], strides = [1, 1]} : vector<8x256xf32> to vector<8x128xf32>
    %9 = vector.extract_strided_slice %7 {offsets = [0, 128], sizes = [8, 128], strides = [1, 1]} : vector<8x256xf32> to vector<8x128xf32>
    %c0_6 = arith.constant 0 : index
    %c0_7 = arith.constant 0 : index
    %10 = vector.load %arg4[%c0_6, %c0_7] : memref<1x128xf32, #tpu.memory_space<vmem>>, vector<1x128xf32>
    %11 = vector.broadcast %10 : vector<1x128xf32> to vector<8x128xf32>
    %12 = arith.mulf %8, %11 : vector<8x128xf32>
    %cst_8 = arith.constant dense<0.000000e+00> : vector<8xf32>
    %13 = vector.multi_reduction <add>, %12, %cst_8 [1] : vector<8x128xf32> to vector<8xf32>
    %14 = vector.shape_cast %13 : vector<8xf32> to vector<8x1xf32>
    %c0_9 = arith.constant 0 : index
    %c0_10 = arith.constant 0 : index
    %15 = vector.load %arg5[%c0_9, %c0_10] : memref<1x1xf32, #tpu.memory_space<vmem>>, vector<1x1xf32>
    %16 = vector.broadcast %15 : vector<1x1xf32> to vector<8x1xf32>
    %17 = arith.addf %14, %16 : vector<8x1xf32>
    %c0_11 = arith.constant 0 : index
    %c0_12 = arith.constant 0 : index
    %18 = vector.load %arg8[%c0_11, %c0_12] : memref<8x1xf32, #tpu.memory_space<vmem>>, vector<8x1xf32>
    tpu.vector_store %arg8[%c0_11, %c0_12], %17 {strides = array<i32>} : memref<8x1xf32, #tpu.memory_space<vmem>>, vector<8x1xf32>,
    %19 = arith.truncf %9 : vector<8x128xf32> to vector<8x128xbf16>
    %c0_13 = arith.constant 0 : index
    %c0_14 = arith.constant 0 : index
    %20 = vector.load %arg6[%c0_13, %c0_14] : memref<128x8xbf16, #tpu.memory_space<vmem>>, vector<128x8xbf16>
    %cst_15 = arith.constant dense<0.000000e+00> : vector<8x8xf32>
    %21 = tpu.matmul %19, %20, %cst_15 {dimension_numbers = #tpu.dot_dimension_numbers<[1], [0], [0], [1], [0, 0, 1, 1], [], []>} : vector<8x128xbf16>, vector<128x8xbf16>, vector<8x8xf32> -> vector<8x8xf32>
    %c0_16 = arith.constant 0 : index
    %c0_17 = arith.constant 0 : index
    %22 = vector.load %arg7[%c0_16, %c0_17] : memref<1x8xf32, #tpu.memory_space<vmem>>, vector<1x8xf32>
    %23 = vector.broadcast %22 : vector<1x8xf32> to vector<8x8xf32>
    %24 = arith.addf %21, %23 : vector<8x8xf32>
    %c0_18 = arith.constant 0 : index
    %c0_19 = arith.constant 0 : index
    %25 = vector.load %arg9[%c0_18, %c0_19] : memref<8x8xf32, #tpu.memory_space<vmem>>, vector<8x8xf32>
    tpu.vector_store %arg9[%c0_18, %c0_19], %24 {strides = array<i32>} : memref<8x8xf32, #tpu.memory_space<vmem>>, vector<8x8xf32>,
    return
  }
  func.func @transform_0(%arg0: i32) -> (i32, i32) {
    %c0_i32 = arith.constant 0 : i32
    %c0_i32_0 = arith.constant 0 : i32
    return %arg0, %c0_i32 : i32, i32
  }
  func.func @transform_1(%arg0: i32) -> (i32, i32) {
    %c0_i32 = arith.constant 0 : i32
    %c0_i32_0 = arith.constant 0 : i32
    %c0_i32_1 = arith.constant 0 : i32
    return %c0_i32, %c0_i32_0 : i32, i32
  }
  func.func @transform_2(%arg0: i32) -> (i32, i32) {
    %c0_i32 = arith.constant 0 : i32
    %c0_i32_0 = arith.constant 0 : i32
    %c0_i32_1 = arith.constant 0 : i32
    return %c0_i32, %c0_i32_0 : i32, i32
  }
  func.func @transform_3(%arg0: i32) -> (i32, i32) {
    %c0_i32 = arith.constant 0 : i32
    %c0_i32_0 = arith.constant 0 : i32
    %c0_i32_1 = arith.constant 0 : i32
    return %c0_i32, %c0_i32_0 : i32, i32
  }
  func.func @transform_4(%arg0: i32) -> (i32, i32) {
    %c0_i32 = arith.constant 0 : i32
    %c0_i32_0 = arith.constant 0 : i32
    %c0_i32_1 = arith.constant 0 : i32
    return %c0_i32, %c0_i32_0 : i32, i32
  }
  func.func @transform_5(%arg0: i32) -> (i32, i32) {
    %c0_i32 = arith.constant 0 : i32
    %c0_i32_0 = arith.constant 0 : i32
    %c0_i32_1 = arith.constant 0 : i32
    return %c0_i32, %c0_i32_0 : i32, i32
  }
  func.func @transform_6(%arg0: i32) -> (i32, i32) {
    %c0_i32 = arith.constant 0 : i32
    %c0_i32_0 = arith.constant 0 : i32
    %c0_i32_1 = arith.constant 0 : i32
    return %c0_i32, %c0_i32_0 : i32, i32
  }
  func.func @transform_7(%arg0: i32) -> (i32, i32) {
    %c0_i32 = arith.constant 0 : i32
    %c0_i32_0 = arith.constant 0 : i32
    return %arg0, %c0_i32 : i32, i32
  }
  func.func @transform_8(%arg0: i32) -> (i32, i32) {
    %c0_i32 = arith.constant 0 : i32
    %c0_i32_0 = arith.constant 0 : i32
    return %arg0, %c0_i32 : i32, i32
  }
}

</mosaic_0001>

<llo_original>
// kernel: tpu_custom_call.1
$region0: #{tpu_custom_call.1}
  #allocation0 [shape = 'u32[]', space=smem, size = 0x4, offset = 0x4, fixed_abs, tag = 'smem constant byte address 0x4 - core index']
  #allocation1 [shape = 'u32[72,128]{1,0:T(1,128)}', space=vmem, size = 0x9000, scoped, tag = 'internal scratch']
  #allocation2 [shape = 'f32[1,1]{1,0:T(1,128)S(1)}', space=vmem, size = 0x200, scoped, tag = 'scoped memory for tpu_custom_call.1']
  %s0 = inlined_call_operand.vmem [shape: bf16[8,16], index: 0, kind: input, shape index: {}]
  %s1 = inlined_call_operand.vmem [shape: bf16[16,256], index: 1, kind: input, shape index: {}]
  %s2 = inlined_call_operand.vmem [shape: f32[1,256], index: 2, kind: input, shape index: {}]
  %s3 = inlined_call_operand.vmem [shape: f32[1,128], index: 3, kind: input, shape index: {}]
  %s4 = inlined_call_operand.<no memory space> [shape: f32[1,1], index: 4, kind: input, shape index: {}]
  %s5 = inlined_call_operand.vmem [shape: bf16[128,8], index: 5, kind: input, shape index: {}]
  %s6 = inlined_call_operand.vmem [shape: f32[1,8], index: 6, kind: input, shape index: {}]
  %s7 = inlined_call_operand.vmem [shape: f32[8,1], index: 7, kind: output, shape index: {0}]
  %s8 = inlined_call_operand.hbm [shape: f32[8,8], index: 8, kind: output, shape index: {1}]
  %9 = xla_tuple %s7, %s8
  %s10 = sld [smem:[#allocation0]]
  $region46: #{tpu_custom_call.1} parent=0
    _
  %s12 = ssub.s32 1, %s10
  %s13 = scalar_select 0, %s12, %s10
  %v14 = vstv %s4
  %15 = vst [vmem:[#allocation2] sm:$0x1] %v14
  $region1: #{tpu_custom_call.1} parent=0
    #allocation3 [shape = 'u8[4096]{0}', space=vmem, size = 0x1000, scoped, tag = 'output window, operand 1, single buffered']
    #allocation4 [shape = 's32[1]{0}', space=sflag, size = 0x4, scoped, tag = 'scoped memory for tpu_custom_call.1']
    %16 = vsyncpa [#allocation4], 0
    // Predicated region
    $region2: #{tpu_custom_call.1} parent=1 // pred_check
      _
    $region3: #{tpu_custom_call.1} parent=1 // pred_check_branch
      %18 = sbr.rel (0) target = $region5
    $region4: #{tpu_custom_call.1} parent=1 // pred_region
      _
    $region5: #{tpu_custom_call.1} parent=1 // pred_fallthru
      _
    // Predicated region
    $region6: #{tpu_custom_call.1} parent=1 // pred_check
      _
    $region7: #{tpu_custom_call.1} parent=1 // pred_check_branch
      %20 = sbr.rel (0) target = $region9
    $region8: #{tpu_custom_call.1} parent=1 // pred_region
      _
    $region9: #{tpu_custom_call.1} parent=1 // pred_fallthru
      _
    // Predicated region
    $region10: #{tpu_custom_call.1} parent=1 // pred_check
      _
    $region11: #{tpu_custom_call.1} parent=1 // pred_check_branch
      %22 = sbr.rel (0) target = $region13
    $region12: #{tpu_custom_call.1} parent=1 // pred_region
      _
    $region13: #{tpu_custom_call.1} parent=1 // pred_fallthru
      _
    // Predicated region
    $region14: #{tpu_custom_call.1} parent=1 // pred_check
      _
    $region15: #{tpu_custom_call.1} parent=1 // pred_check_branch
      %24 = sbr.rel (0) target = $region17
    $region16: #{tpu_custom_call.1} parent=1 // pred_region
      _
    $region17: #{tpu_custom_call.1} parent=1 // pred_fallthru
      _
    // Predicated region
    $region18: #{tpu_custom_call.1} parent=1 // pred_check
      _
    $region19: #{tpu_custom_call.1} parent=1 // pred_check_branch
      %26 = sbr.rel (0) target = $region21
    $region20: #{tpu_custom_call.1} parent=1 // pred_region
      _
    $region21: #{tpu_custom_call.1} parent=1 // pred_fallthru
      _
    // Predicated region
    $region22: #{tpu_custom_call.1} parent=1 // pred_check
      _
    $region23: #{tpu_custom_call.1} parent=1 // pred_check_branch
      %28 = sbr.rel (0) target = $region25
    $region24: #{tpu_custom_call.1} parent=1 // pred_region
      _
    $region25: #{tpu_custom_call.1} parent=1 // pred_fallthru
      _
    // Predicated region
    $region26: #{tpu_custom_call.1} parent=1 // pred_check
      _
    $region27: #{tpu_custom_call.1} parent=1 // pred_check_branch
      %30 = sbr.rel (0) target = $region29
    $region28: #{tpu_custom_call.1} parent=1 // pred_region
      _
    $region29: #{tpu_custom_call.1} parent=1 // pred_fallthru
      _
    %v32 = vld [vmem:[%s0] sm:$0xf]
    %v33 = vld [vmem:[%s1] sm:$0xff]
    %v34 = vld [vmem:[%s1 + $0x8] sm:$0xff]
    %v35 = vld [vmem:[%s2] sm:$0x3]
    %v37 = vperm.slane %v35, 0
    %v38 = vperm.slane %v35, 1
    %v43 = vunpack.c.l.b16 %v33
    %v44 = vunpack.c.h.b16 %v33
    %v45 = vunpack.c.l.b16 %v34
    %v46 = vunpack.c.h.b16 %v34
    %v47 = vpack.c.b16 %v45, %v43
    %v48 = vpack.c.b16 %v46, %v44
    %vm51 = vcmask 130048
    %v53 = vsel %vm51, %v32, 0
    %55 = vmatpush.bf16.msra.mxu0 0
    %56 = vmatpush.bf16.msra.mxu0 0
    %57 = vmatpush.bf16.msra.mxu0 0
    %58 = vmatpush.bf16.msra.mxu0 0
    %59 = vmatpush.bf16.msra.mxu0 0
    %60 = vmatpush.bf16.msra.mxu0 0
    %61 = vmatpush.bf16.msra.mxu0 0
    %62 = vmatpush.bf16.msra.mxu0 %v47
    %63 = vmatmul.bf16.gmra.mxu0 %v53
    %v64 = vpop.f32.mrf.mxu0
    %v65 = vadd.f32 %v37, %v64
    %v66 = vpop.f32.mrf.mxu0
    %67 = vdwg.mxu0
    %68 = vmatpush.bf16.msra.mxu0 0
    %69 = vmatpush.bf16.msra.mxu0 0
    %70 = vmatpush.bf16.msra.mxu0 0
    %71 = vmatpush.bf16.msra.mxu0 0
    %72 = vmatpush.bf16.msra.mxu0 0
    %73 = vmatpush.bf16.msra.mxu0 0
    %74 = vmatpush.bf16.msra.mxu0 0
    %75 = vmatpush.bf16.msra.mxu0 %v48
    %76 = vmatmul.bf16.gmra.mxu0 %v53
    %v77 = vpop.f32.mrf.mxu0
    %v78 = vadd.f32 %v38, %v77
    %v79 = vpop.f32.mrf.mxu0
    %80 = vdwg.mxu0
    %v81 = vmax.f32 %v65, 0.0
    %v82 = vmax.f32 %v78, 0.0
    %v83 = vld [vmem:[%s3] sm:$0x1]
    %v85 = vperm.slane %v83, 0
    %v87 = vmul.f32 %v81, %v85
    %88 = vadd.xlane.f32.xlu0 %v87
    %v89 = vpop.xlane.xlu0 %88
    %v90 = vld [vmem:[#allocation2] sm:$0x1]
    %v92 = vperm.slane %v90, 0
    %v94 = vadd.f32 %v89, %v92
    %vm95 = vcmask 7168
    %96 = vst.msk [vmem:[%s7] sm:$0xff] %vm95, %v94
    %v97 = vpack.c.bf16 %v82, %v82
    %v98 = vld [vmem:[%s5] sm:$0xf]
    %v99 = vld [vmem:[%s5 + $0x4] sm:$0xf]
    %v100 = vld [vmem:[%s5 + $0x8] sm:$0xf]
    %v101 = vld [vmem:[%s5 + $0xc] sm:$0xf]
    %v102 = vld [vmem:[%s5 + $0x10] sm:$0xf]
    %v103 = vld [vmem:[%s5 + $0x14] sm:$0xf]
    %v104 = vld [vmem:[%s5 + $0x18] sm:$0xf]
    %v105 = vld [vmem:[%s5 + $0x1c] sm:$0xf]
    %v106 = vld [vmem:[%s5 + $0x20] sm:$0xf]
    %v107 = vld [vmem:[%s5 + $0x24] sm:$0xf]
    %v108 = vld [vmem:[%s5 + $0x28] sm:$0xf]
    %v109 = vld [vmem:[%s5 + $0x2c] sm:$0xf]
    %v110 = vld [vmem:[%s5 + $0x30] sm:$0xf]
    %v111 = vld [vmem:[%s5 + $0x34] sm:$0xf]
    %v112 = vld [vmem:[%s5 + $0x38] sm:$0xf]
    %v113 = vld [vmem:[%s5 + $0x3c] sm:$0xf]
    %v114 = vld [vmem:[%s6] sm:$0x1]
    %v116 = vperm.slane %v114, 0
    %v134 = vunpack.c.l.b16 %v98
    %v135 = vunpack.c.l.b16 %v99
    %v136 = vunpack.c.l.b16 %v100
    %v137 = vunpack.c.l.b16 %v101
    %v138 = vunpack.c.l.b16 %v102
    %v139 = vunpack.c.l.b16 %v103
    %v140 = vunpack.c.l.b16 %v104
    %v141 = vunpack.c.l.b16 %v105
    %v142 = vunpack.c.l.b16 %v106
    %v143 = vunpack.c.l.b16 %v107
    %v144 = vunpack.c.l.b16 %v108
    %v145 = vunpack.c.l.b16 %v109
    %v146 = vunpack.c.l.b16 %v110
    %v147 = vunpack.c.l.b16 %v111
    %v148 = vunpack.c.l.b16 %v112
    %v149 = vunpack.c.l.b16 %v113
    %v150 = vpack.c.b16 %v135, %v134
    %v151 = vpack.c.b16 %v137, %v136
    %v152 = vpack.c.b16 %v139, %v138
    %v153 = vpack.c.b16 %v141, %v140
    %v154 = vpack.c.b16 %v143, %v142
    %v155 = vpack.c.b16 %v145, %v144
    %v156 = vpack.c.b16 %v147, %v146
    %v157 = vpack.c.b16 %v149, %v148
    %166 = vmatpush.bf16.msra.mxu0 %v157
    %167 = vmatpush.bf16.msra.mxu0 %v156
    %168 = vmatpush.bf16.msra.mxu0 %v155
    %169 = vmatpush.bf16.msra.mxu0 %v154
    %170 = vmatpush.bf16.msra.mxu0 %v153
    %171 = vmatpush.bf16.msra.mxu0 %v152
    %172 = vmatpush.bf16.msra.mxu0 %v151
    %173 = vmatpush.bf16.msra.mxu0 %v150
    %174 = vmatmul.bf16.gmra.mxu0 %v97
    %v175 = vpop.f32.mrf.mxu0
    %v176 = vadd.f32 %v116, %v175
    %v177 = vpop.f32.mrf.mxu0
    %178 = vdwg.mxu0
    %vm179 = vcmask 64512
    %180 = vst.msk [vmem:[#allocation3] sm:$0xff] %vm179, %v176
    // Predicated region
    $region30: #{tpu_custom_call.1} parent=1 // pred_check
      _
    $region31: #{tpu_custom_call.1} parent=1 // pred_check_branch
      %182 = sbr.rel (0) target = $region33
    $region32: #{tpu_custom_call.1} parent=1 // pred_region
      _
    $region33: #{tpu_custom_call.1} parent=1 // pred_fallthru
      _
    // Predicated region
    $region34: #{tpu_custom_call.1} parent=1 // pred_check
      _
    $region35: #{tpu_custom_call.1} parent=1 // pred_check_branch
      %184 = sbr.rel (0) target = $region37
    $region36: #{tpu_custom_call.1} parent=1 // pred_region
      %186 = vsyncadd [#allocation4], 0
      %s188 = sshll.u32 [#allocation3], 4
      %s189 = int_to_ptr.vmem [resolvable:$true] %s188
      %s190 = sshll.u32 %s8, 4
      %s191 = int_to_ptr.hbm [resolvable:$true] %s190
      %193 = dma.vmem_to_hbm [thread:$0]  %s189, 128, %s191, [#allocation4]
    $region37: #{tpu_custom_call.1} parent=1 // pred_fallthru
      _
    // Predicated region
    $region38: #{tpu_custom_call.1} parent=1 // pred_check
      _
    $region39: #{tpu_custom_call.1} parent=1 // pred_check_branch
      %195 = sbr.rel (0) target = $region41
    $region40: #{tpu_custom_call.1} parent=1 // pred_region
      _
    $region41: #{tpu_custom_call.1} parent=1 // pred_fallthru
      _
    // Predicated region
    $region42: #{tpu_custom_call.1} parent=1 // pred_check
      _
    $region43: #{tpu_custom_call.1} parent=1 // pred_check_branch
      %197 = sbr.rel (0) target = $region45
    $region44: #{tpu_custom_call.1} parent=1 // pred_region
      %199 = dma.done [#allocation4], 128
    $region45: #{tpu_custom_call.1} parent=1 // pred_fallthru
      _
    %200 = vsyncpa [#allocation4], 1

</llo_original>
